<compile_context>
chip_gen: v7x
topology: tpu7x:2x2x1
jax: 0.10.0
libtpu: 0.0.40
codegen_flags: <defaults>
</compile_context>

<pallas_src>
import functools

import jax
import jax.numpy as jnp
from jax import lax
from jax.experimental import pallas as pl
from jax.experimental.pallas import tpu as pltpu


def _encode_layer_kernel(x_ref, mask_ref,
                         wqkv_ref, bqkv_ref, wo_ref, bo_ref, g_ref, beta_ref,
                         out_ref, attn_ref,
                         acc_ref,
                         *, d_k, d_v, eps, mxu_dtype):
    # grid = (B, n_head): program_id(0) = batch element, program_id(1) = head.
    h = pl.program_id(1)
    n_head = pl.num_programs(1)

    x = x_ref[0]                                   # (T, D) f32; resident across the head loop
    x_mx = x.astype(mxu_dtype)

    # --- fused per-head [q | k | v] projection (1/sqrt(d_k) already folded into q cols) ---
    w_h = wqkv_ref[h]                              # (D, 2*d_k + d_v), bf16, VMEM-resident
    qkv = jnp.dot(x_mx, w_h, preferred_element_type=jnp.float32) + bqkv_ref[h]   # (T, 2dk+dv) f32

    q = qkv[:, :d_k]
    k = qkv[:, d_k:2 * d_k]
    v = qkv[:, 2 * d_k:]

    # --- scaled dot-product attention for this head ---
    s = lax.dot_general(q.astype(mxu_dtype), k.astype(mxu_dtype),
                        (((1,), (1,)), ((), ())),
                        preferred_element_type=jnp.float32)          # (T, T) f32

    # Additive masking with a large finite negative. Reference uses -inf; -1e30 keeps
    # fully-masked rows NaN-free (they become uniform) while masked probs underflow to 0.
    s = s + mask_ref[0].astype(jnp.float32) * jnp.float32(-1e30)

    m = jnp.max(s, axis=-1, keepdims=True)
    e = jnp.exp(s - m)
    p = e / jnp.sum(e, axis=-1, keepdims=True)     # exact normalization (f32)

    # Head-major, lane-dense single store of this head's probabilities.
    attn_ref[0, 0] = p.astype(attn_ref.dtype)

    head = jnp.dot(p.astype(mxu_dtype), v.astype(mxu_dtype),
                   preferred_element_type=jnp.float32)               # (T, d_v)
    # Partial contribution of concat(heads) @ Wo: head_h @ Wo[h*d_v:(h+1)*d_v, :].
    contrib = jnp.dot(head.astype(mxu_dtype), wo_ref[h],
                      preferred_element_type=jnp.float32)            # (T, D)

    @pl.when(h == 0)
    def _():
        acc_ref[...] = jnp.zeros_like(acc_ref)

    acc_ref[...] += contrib

    # --- finalize: output bias + residual + LayerNorm, once per batch element ---
    @pl.when(h == n_head - 1)
    def _():
        res = acc_ref[...] + bo_ref[...] + x
        mean = jnp.mean(res, axis=-1, keepdims=True)
        var = jnp.mean((res - mean) ** 2, axis=-1, keepdims=True)
        y = (res - mean) * lax.rsqrt(var + eps) * g_ref[...] + beta_ref[...]
        out_ref[0] = y.astype(out_ref.dtype)


def prepare_encode_layer_params(params, *, n_head, d_k, d_v, mxu_dtype=jnp.bfloat16):
    """One-time host-side param prep (hoisted out of the per-call path).

    * fuses wq|wk|wv into one per-head (H, D, 2*d_k+d_v) weight, pre-cast to bf16,
    * folds 1/sqrt(d_k) into the q columns / q bias,
    * reshapes wo into per-head (H, d_v, D) slices, pre-cast to bf16.
    """
    wq, bq, wk, bk, wv, bv, wo, bo, g, beta = params
    D = wq.shape[0]
    H = n_head
    scale = 1.0 / (float(d_k) ** 0.5)

    wq_h = (wq * scale).reshape(D, H, d_k).transpose(1, 0, 2)      # (H, D, d_k)
    wk_h = wk.reshape(D, H, d_k).transpose(1, 0, 2)
    wv_h = wv.reshape(D, H, d_v).transpose(1, 0, 2)
    wqkv = jnp.concatenate([wq_h, wk_h, wv_h], axis=-1).astype(mxu_dtype)   # (H, D, 2dk+dv)

    bq_h = (bq[0] * scale).reshape(H, 1, d_k)
    bk_h = bk[0].reshape(H, 1, d_k)
    bv_h = bv[0].reshape(H, 1, d_v)
    bqkv = jnp.concatenate([bq_h, bk_h, bv_h], axis=-1).astype(jnp.float32)  # (H, 1, 2dk+dv)

    wo_h = wo.reshape(H, d_v, D).astype(mxu_dtype)                 # (H, d_v, D)
    return (wqkv, bqkv, wo_h,
            bo.astype(jnp.float32), g.astype(jnp.float32), beta.astype(jnp.float32))


def _const_spec(arr):
    ndim = arr.ndim
    return pl.BlockSpec(arr.shape, lambda b, h: (0,) * ndim)


def encode_layer_forward(enc_input, enc_mask, prepared, *, n_head, d_k, d_v,
                         mxu_dtype=jnp.bfloat16, attn_dtype=jnp.float32):
    """enc_input: (B, T, d_model) f32; enc_mask: (B, T, T) int (nonzero = masked).

    `prepared` comes from prepare_encode_layer_params (one-time).
    Returns (enc_output (B, T, d_model), enc_attn (n_head*B, T, T)).
    attn_dtype=jnp.bfloat16 halves the dominant attn writeback traffic if tolerated.
    """
    B, T, D = enc_input.shape
    H = n_head
    wqkv, bqkv, wo_h, bo, g, beta = prepared

    mask8 = (enc_mask != 0).astype(jnp.int8)       # 4x less mask DMA than int32

    kernel = functools.partial(_encode_layer_kernel, d_k=d_k, d_v=d_v,
                               eps=1e-5, mxu_dtype=mxu_dtype)

    enc_output, attn_hb = pl.pallas_call(
        kernel,
        out_shape=(
            jax.ShapeDtypeStruct((B, T, D), jnp.float32),
            jax.ShapeDtypeStruct((H, B, T, T), attn_dtype),   # head-major: no wrapper transpose
        ),
        grid=(B, H),
        in_specs=[
            pl.BlockSpec((1, T, D), lambda b, h: (b, 0, 0)),  # x (re-used across the head loop)
            pl.BlockSpec((1, T, T), lambda b, h: (b, 0, 0)),  # mask (int8)
            _const_spec(wqkv), _const_spec(bqkv),             # weights resident in VMEM
            _const_spec(wo_h), _const_spec(bo),
            _const_spec(g), _const_spec(beta),
        ],
        out_specs=(
            pl.BlockSpec((1, T, D), lambda b, h: (b, 0, 0)),      # revisited across h (accum)
            pl.BlockSpec((1, 1, T, T), lambda b, h: (h, b, 0, 0)),
        ),
        scratch_shapes=[pltpu.VMEM((T, D), jnp.float32)],          # output-projection accumulator
        compiler_params=pltpu.CompilerParams(
            dimension_semantics=("parallel", "arbitrary"),
            vmem_limit_bytes=32 * 1024 * 1024),                    # v5e default is only 16 MiB
    )(enc_input.astype(jnp.float32), mask8, wqkv, bqkv, wo_h, bo, g, beta)

    # PyTorch reference emits attn as (n_head*B, T, T) with index = head*B + batch;
    # the kernel already wrote head-major, so this reshape is free.
    enc_attn = attn_hb.reshape(H * B, T, T)
    return enc_output, enc_attn


def encode_layer_reference(enc_input, enc_mask, params, *, n_head, d_k, d_v, eps=1e-5):
    """Pure-JAX f32 reference for correctness checking."""
    B, T, D = enc_input.shape
    wq, bq, wk, bk, wv, bv, wo, bo, g, beta = params
    x = enc_input
    q = (x @ wq + bq[0]).reshape(B, T, n_head, d_k).transpose(0, 2, 1, 3)
    k = (x @ wk + bk[0]).reshape(B, T, n_head, d_k).transpose(0, 2, 1, 3)
    v = (x @ wv + bv[0]).reshape(B, T, n_head, d_v).transpose(0, 2, 1, 3)
    s = jnp.einsum('bhqd,bhkd->bhqk', q, k) / jnp.sqrt(jnp.float32(d_k))
    s = jnp.where((enc_mask != 0)[:, None, :, :], -jnp.inf, s)
    p = jax.nn.softmax(s, axis=-1)
    heads = jnp.einsum('bhqk,bhkd->bhqd', p, v)
    concat = heads.transpose(0, 2, 1, 3).reshape(B, T, n_head * d_v)
    o = concat @ wo + bo[0]
    res = o + x
    mean = jnp.mean(res, axis=-1, keepdims=True)
    var = jnp.mean((res - mean) ** 2, axis=-1, keepdims=True)
    out = (res - mean) * lax.rsqrt(var + eps) * g[0] + beta[0]
    attn = p.transpose(1, 0, 2, 3).reshape(n_head * B, T, T)
    return out, attn


def init_params(key, n_head, d_model, d_k, d_v):
    ks = jax.random.split(key, 8)
    scale = 0.1
    wq = scale * jax.random.normal(ks[0], (d_model, n_head * d_k), jnp.float32)
    wk = scale * jax.random.normal(ks[1], (d_model, n_head * d_k), jnp.float32)
    wv = scale * jax.random.normal(ks[2], (d_model, n_head * d_v), jnp.float32)
    wo = scale * jax.random.normal(ks[3], (n_head * d_v, d_model), jnp.float32)
    bq = scale * jax.random.normal(ks[4], (1, n_head * d_k), jnp.float32)
    bk = scale * jax.random.normal(ks[5], (1, n_head * d_k), jnp.float32)
    bv = scale * jax.random.normal(ks[6], (1, n_head * d_v), jnp.float32)
    bo = scale * jax.random.normal(ks[7], (1, d_model), jnp.float32)
    g = jnp.ones((1, d_model), jnp.float32)       # LayerNorm weight
    beta = jnp.zeros((1, d_model), jnp.float32)   # LayerNorm bias
    return (wq, bq, wk, bk, wv, bv, wo, bo, g, beta)


if __name__ == "__main__":
    B, T = 2, 8
    n_head, d_model, d_k, d_v, d_f = 4, 32, 8, 8, 64   # d_f belongs to the discarded FFN

    key = jax.random.PRNGKey(0)
    k_x, k_p = jax.random.split(key)
    enc_input = jax.random.normal(k_x, (B, T, d_model), jnp.float32)

    # Padding-style key mask: last time step is padding -> masked for every query.
    enc_mask = jnp.zeros((B, T, T), jnp.int32).at[:, :, T - 1].set(1)

    params = init_params(k_p, n_head, d_model, d_k, d_v)
    prepared = prepare_encode_layer_params(params, n_head=n_head, d_k=d_k, d_v=d_v)

    enc_output, enc_attn = encode_layer_forward(
        enc_input, enc_mask, prepared, n_head=n_head, d_k=d_k, d_v=d_v)
    jax.block_until_ready((enc_output, enc_attn))

    ref_out, ref_attn = encode_layer_reference(
        enc_input, enc_mask, params, n_head=n_head, d_k=d_k, d_v=d_v)

    assert enc_output.shape == (B, T, d_model)
    assert enc_attn.shape == (n_head * B, T, T)
    assert bool(jnp.all(jnp.isfinite(enc_output)))
    assert bool(jnp.all(jnp.isfinite(enc_attn)))
    # attention rows sum to 1 (exact divide); padding column is exactly zero
    assert bool(jnp.allclose(jnp.sum(enc_attn, axis=-1), 1.0, atol=1e-4))
    assert bool(jnp.allclose(enc_attn[:, :, T - 1], 0.0, atol=1e-6))
    # matches the pure-JAX f32 reference within bf16-matmul tolerance
    assert bool(jnp.allclose(enc_attn, ref_attn, atol=1e-2))
    assert bool(jnp.allclose(enc_output, ref_out, atol=5e-2))

    print("KERNEL_OK")
</pallas_src>

<mosaic_0001>
module attributes {stable_mosaic.version = 11 : i64} {
  func.func @_encode_layer_kernel(%arg0: i32, %arg1: i32, %arg2: memref<1x8x32xf32, #tpu.memory_space<vmem>>, %arg3: memref<1x8x8xi8, #tpu.memory_space<vmem>>, %arg4: memref<4x32x24xbf16, #tpu.memory_space<vmem>>, %arg5: memref<4x1x24xf32, #tpu.memory_space<vmem>>, %arg6: memref<4x8x32xbf16, #tpu.memory_space<vmem>>, %arg7: memref<1x32xf32, #tpu.memory_space<vmem>>, %arg8: memref<1x32xf32, #tpu.memory_space<vmem>>, %arg9: memref<1x32xf32, #tpu.memory_space<vmem>>, %arg10: memref<1x8x32xf32, #tpu.memory_space<vmem>>, %arg11: memref<1x1x8x8xf32, #tpu.memory_space<vmem>>, %arg12: memref<8x32xf32, #tpu.memory_space<vmem>>) attributes {dimension_semantics = [#tpu.dimension_semantics<parallel>, #tpu.dimension_semantics<arbitrary>], iteration_bounds = array<i64: 2, 4>, scalar_prefetch = 0 : i64, scratch_operands = 1 : i64, tpu.core_type = #tpu.core_type<tc>, window_params = [{transform_indices = @transform_0, window_bounds = array<i64: 1, 8, 32>}, {transform_indices = @transform_1, window_bounds = array<i64: 1, 8, 8>}, {pipeline_mode = #tpu.pipeline_mode<synchronous>, transform_indices = @transform_2, window_bounds = array<i64: 4, 32, 24>}, {pipeline_mode = #tpu.pipeline_mode<synchronous>, transform_indices = @transform_3, window_bounds = array<i64: 4, 1, 24>}, {pipeline_mode = #tpu.pipeline_mode<synchronous>, transform_indices = @transform_4, window_bounds = array<i64: 4, 8, 32>}, {pipeline_mode = #tpu.pipeline_mode<synchronous>, transform_indices = @transform_5, window_bounds = array<i64: 1, 32>}, {pipeline_mode = #tpu.pipeline_mode<synchronous>, transform_indices = @transform_6, window_bounds = array<i64: 1, 32>}, {pipeline_mode = #tpu.pipeline_mode<synchronous>, transform_indices = @transform_7, window_bounds = array<i64: 1, 32>}, {transform_indices = @transform_8, window_bounds = array<i64: 1, 8, 32>}, {transform_indices = @transform_9, window_bounds = array<i64: 1, 1, 8, 8>}]} {
    %c0 = arith.constant 0 : index
    %c0_0 = arith.constant 0 : index
    %c0_1 = arith.constant 0 : index
    %0 = vector.load %arg2[%c0, %c0_0, %c0_1] : memref<1x8x32xf32, #tpu.memory_space<vmem>>, vector<1x8x32xf32>
    %1 = vector.shape_cast %0 : vector<1x8x32xf32> to vector<8x32xf32>
    %2 = arith.truncf %1 : vector<8x32xf32> to vector<8x32xbf16>
    %3 = arith.index_cast %arg1 : i32 to index
    %c0_2 = arith.constant 0 : index
    %c0_3 = arith.constant 0 : index
    %4 = vector.load %arg4[%3, %c0_2, %c0_3] : memref<4x32x24xbf16, #tpu.memory_space<vmem>>, vector<1x32x24xbf16>
    %5 = vector.shape_cast %4 : vector<1x32x24xbf16> to vector<32x24xbf16>
    %cst = arith.constant dense<0.000000e+00> : vector<8x24xf32>
    %6 = tpu.matmul %2, %5, %cst {dimension_numbers = #tpu.dot_dimension_numbers<[1], [0], [0], [1], [0, 0, 1, 1], [], []>} : vector<8x32xbf16>, vector<32x24xbf16>, vector<8x24xf32> -> vector<8x24xf32>
    %7 = arith.index_cast %arg1 : i32 to index
    %c0_4 = arith.constant 0 : index
    %c0_5 = arith.constant 0 : index
    %8 = vector.load %arg5[%7, %c0_4, %c0_5] : memref<4x1x24xf32, #tpu.memory_space<vmem>>, vector<1x1x24xf32>
    %9 = vector.shape_cast %8 : vector<1x1x24xf32> to vector<1x24xf32>
    %10 = vector.broadcast %9 : vector<1x24xf32> to vector<8x24xf32>
    %11 = arith.addf %6, %10 : vector<8x24xf32>
    %12 = vector.extract_strided_slice %11 {offsets = [0, 0], sizes = [8, 8], strides = [1, 1]} : vector<8x24xf32> to vector<8x8xf32>
    %13 = vector.extract_strided_slice %11 {offsets = [0, 8], sizes = [8, 8], strides = [1, 1]} : vector<8x24xf32> to vector<8x8xf32>
    %14 = vector.extract_strided_slice %11 {offsets = [0, 16], sizes = [8, 8], strides = [1, 1]} : vector<8x24xf32> to vector<8x8xf32>
    %15 = arith.truncf %12 : vector<8x8xf32> to vector<8x8xbf16>
    %16 = arith.truncf %13 : vector<8x8xf32> to vector<8x8xbf16>
    %cst_6 = arith.constant dense<0.000000e+00> : vector<8x8xf32>
    %17 = tpu.matmul %15, %16, %cst_6 {dimension_numbers = #tpu.dot_dimension_numbers<[1], [1], [0], [0], [0, 0, 1, 0], [], []>} : vector<8x8xbf16>, vector<8x8xbf16>, vector<8x8xf32> -> vector<8x8xf32>
    %c0_7 = arith.constant 0 : index
    %c0_8 = arith.constant 0 : index
    %c0_9 = arith.constant 0 : index
    %18 = vector.load %arg3[%c0_7, %c0_8, %c0_9] : memref<1x8x8xi8, #tpu.memory_space<vmem>>, vector<1x8x8xi8>
    %19 = vector.shape_cast %18 : vector<1x8x8xi8> to vector<8x8xi8>
    %20 = arith.sitofp %19 : vector<8x8xi8> to vector<8x8xf32>
    %cst_10 = arith.constant -1.000000e+30 : f32
    %21 = vector.broadcast %cst_10 : f32 to vector<8x8xf32>
    %22 = arith.mulf %20, %21 : vector<8x8xf32>
    %23 = arith.addf %17, %22 : vector<8x8xf32>
    %cst_11 = arith.constant dense<0xFF800000> : vector<8xf32>
    %24 = vector.multi_reduction <maximumf>, %23, %cst_11 [1] : vector<8x8xf32> to vector<8xf32>
    %25 = vector.shape_cast %24 : vector<8xf32> to vector<8x1xf32>
    %26 = vector.broadcast %25 : vector<8x1xf32> to vector<8x8xf32>
    %27 = arith.subf %23, %26 : vector<8x8xf32>
    %28 = math.exp %27 : vector<8x8xf32>
    %cst_12 = arith.constant dense<0.000000e+00> : vector<8xf32>
    %29 = vector.multi_reduction <add>, %28, %cst_12 [1] : vector<8x8xf32> to vector<8xf32>
    %30 = vector.shape_cast %29 : vector<8xf32> to vector<8x1xf32>
    %31 = vector.broadcast %30 : vector<8x1xf32> to vector<8x8xf32>
    %32 = arith.divf %28, %31 : vector<8x8xf32>
    %c0_13 = arith.constant 0 : index
    %c0_14 = arith.constant 0 : index
    %c0_15 = arith.constant 0 : index
    %c0_16 = arith.constant 0 : index
    %33 = vector.load %arg11[%c0_13, %c0_14, %c0_15, %c0_16] : memref<1x1x8x8xf32, #tpu.memory_space<vmem>>, vector<1x1x8x8xf32>
    %34 = vector.shape_cast %33 : vector<1x1x8x8xf32> to vector<8x8xf32>
    %35 = vector.shape_cast %32 : vector<8x8xf32> to vector<1x1x8x8xf32>
    tpu.vector_store %arg11[%c0_13, %c0_14, %c0_15, %c0_16], %35 {strides = array<i32>} : memref<1x1x8x8xf32, #tpu.memory_space<vmem>>, vector<1x1x8x8xf32>,
    %36 = arith.truncf %32 : vector<8x8xf32> to vector<8x8xbf16>
    %37 = arith.truncf %14 : vector<8x8xf32> to vector<8x8xbf16>
    %cst_17 = arith.constant dense<0.000000e+00> : vector<8x8xf32>
    %38 = tpu.matmul %36, %37, %cst_17 {dimension_numbers = #tpu.dot_dimension_numbers<[1], [0], [0], [1], [0, 0, 1, 1], [], []>} : vector<8x8xbf16>, vector<8x8xbf16>, vector<8x8xf32> -> vector<8x8xf32>
    %39 = arith.truncf %38 : vector<8x8xf32> to vector<8x8xbf16>
    %40 = arith.index_cast %arg1 : i32 to index
    %c0_18 = arith.constant 0 : index
    %c0_19 = arith.constant 0 : index
    %41 = vector.load %arg6[%40, %c0_18, %c0_19] : memref<4x8x32xbf16, #tpu.memory_space<vmem>>, vector<1x8x32xbf16>
    %42 = vector.shape_cast %41 : vector<1x8x32xbf16> to vector<8x32xbf16>
    %cst_20 = arith.constant dense<0.000000e+00> : vector<8x32xf32>
    %43 = tpu.matmul %39, %42, %cst_20 {dimension_numbers = #tpu.dot_dimension_numbers<[1], [0], [0], [1], [0, 0, 1, 1], [], []>} : vector<8x8xbf16>, vector<8x32xbf16>, vector<8x32xf32> -> vector<8x32xf32>
    %c0_i32 = arith.constant 0 : i32
    %44 = arith.cmpi eq, %arg1, %c0_i32 : i32
    %45 = arith.extui %44 : i1 to i32
    %c0_i32_21 = arith.constant 0 : i32
    %46 = arith.cmpi ne, %45, %c0_i32_21 : i32
    scf.if %46 {
      %cst_27 = arith.constant 0.000000e+00 : f32
      %53 = vector.broadcast %cst_27 : f32 to vector<8x32xf32>
      %c0_28 = arith.constant 0 : index
      %c0_29 = arith.constant 0 : index
      %54 = vector.load %arg12[%c0_28, %c0_29] : memref<8x32xf32, #tpu.memory_space<vmem>>, vector<8x32xf32>
      tpu.vector_store %arg12[%c0_28, %c0_29], %53 {strides = array<i32>} : memref<8x32xf32, #tpu.memory_space<vmem>>, vector<8x32xf32>,
    } else {
    }
    %c0_22 = arith.constant 0 : index
    %c0_23 = arith.constant 0 : index
    %47 = vector.load %arg12[%c0_22, %c0_23] : memref<8x32xf32, #tpu.memory_space<vmem>>, vector<8x32xf32>
    %48 = arith.addf %47, %43 : vector<8x32xf32>
    %c0_24 = arith.constant 0 : index
    %c0_25 = arith.constant 0 : index
    %49 = vector.load %arg12[%c0_24, %c0_25] : memref<8x32xf32, #tpu.memory_space<vmem>>, vector<8x32xf32>
    tpu.vector_store %arg12[%c0_24, %c0_25], %48 {strides = array<i32>} : memref<8x32xf32, #tpu.memory_space<vmem>>, vector<8x32xf32>,
    %c3_i32 = arith.constant 3 : i32
    %50 = arith.cmpi eq, %arg1, %c3_i32 : i32
    %51 = arith.extui %50 : i1 to i32
    %c0_i32_26 = arith.constant 0 : i32
    %52 = arith.cmpi ne, %51, %c0_i32_26 : i32
    scf.if %52 {
      %c0_27 = arith.constant 0 : index
      %c0_28 = arith.constant 0 : index
      %53 = vector.load %arg12[%c0_27, %c0_28] : memref<8x32xf32, #tpu.memory_space<vmem>>, vector<8x32xf32>
      %c0_29 = arith.constant 0 : index
      %c0_30 = arith.constant 0 : index
      %54 = vector.load %arg7[%c0_29, %c0_30] : memref<1x32xf32, #tpu.memory_space<vmem>>, vector<1x32xf32>
      %55 = vector.broadcast %54 : vector<1x32xf32> to vector<8x32xf32>
      %56 = arith.addf %53, %55 : vector<8x32xf32>
      %57 = arith.addf %56, %1 : vector<8x32xf32>
      %cst_31 = arith.constant dense<0.000000e+00> : vector<8xf32>
      %58 = vector.multi_reduction <add>, %57, %cst_31 [1] : vector<8x32xf32> to vector<8xf32>
      %59 = vector.shape_cast %58 : vector<8xf32> to vector<8x1xf32>
      %cst_32 = arith.constant 3.200000e+01 : f32
      %60 = vector.broadcast %cst_32 : f32 to vector<8x1xf32>
      %61 = arith.divf %59, %60 : vector<8x1xf32>
      %62 = vector.broadcast %61 : vector<8x1xf32> to vector<8x32xf32>
      %63 = arith.subf %57, %62 : vector<8x32xf32>
      %64 = arith.mulf %63, %63 : vector<8x32xf32>
      %cst_33 = arith.constant dense<0.000000e+00> : vector<8xf32>
      %65 = vector.multi_reduction <add>, %64, %cst_33 [1] : vector<8x32xf32> to vector<8xf32>
      %66 = vector.shape_cast %65 : vector<8xf32> to vector<8x1xf32>
      %cst_34 = arith.constant 3.200000e+01 : f32
      %67 = vector.broadcast %cst_34 : f32 to vector<8x1xf32>
      %68 = arith.divf %66, %67 : vector<8x1xf32>
      %69 = vector.broadcast %61 : vector<8x1xf32> to vector<8x32xf32>
      %70 = arith.subf %57, %69 : vector<8x32xf32>
      %cst_35 = arith.constant 9.99999974E-6 : f32
      %71 = vector.broadcast %cst_35 : f32 to vector<8x1xf32>
      %72 = arith.addf %68, %71 : vector<8x1xf32>
      %73 = math.rsqrt %72 : vector<8x1xf32>
      %74 = vector.broadcast %73 : vector<8x1xf32> to vector<8x32xf32>
      %75 = arith.mulf %70, %74 : vector<8x32xf32>
      %c0_36 = arith.constant 0 : index
      %c0_37 = arith.constant 0 : index
      %76 = vector.load %arg8[%c0_36, %c0_37] : memref<1x32xf32, #tpu.memory_space<vmem>>, vector<1x32xf32>
      %77 = vector.broadcast %76 : vector<1x32xf32> to vector<8x32xf32>
      %78 = arith.mulf %75, %77 : vector<8x32xf32>
      %c0_38 = arith.constant 0 : index
      %c0_39 = arith.constant 0 : index
      %79 = vector.load %arg9[%c0_38, %c0_39] : memref<1x32xf32, #tpu.memory_space<vmem>>, vector<1x32xf32>
      %80 = vector.broadcast %79 : vector<1x32xf32> to vector<8x32xf32>
      %81 = arith.addf %78, %80 : vector<8x32xf32>
      %c0_40 = arith.constant 0 : index
      %c0_41 = arith.constant 0 : index
      %c0_42 = arith.constant 0 : index
      %82 = vector.load %arg10[%c0_40, %c0_41, %c0_42] : memref<1x8x32xf32, #tpu.memory_space<vmem>>, vector<1x8x32xf32>
      %83 = vector.shape_cast %82 : vector<1x8x32xf32> to vector<8x32xf32>
      %84 = vector.shape_cast %81 : vector<8x32xf32> to vector<1x8x32xf32>
      tpu.vector_store %arg10[%c0_40, %c0_41, %c0_42], %84 {strides = array<i32>} : memref<1x8x32xf32, #tpu.memory_space<vmem>>, vector<1x8x32xf32>,
    } else {
    }
    return
  }
  func.func @transform_0(%arg0: i32, %arg1: i32) -> (i32, i32, i32) {
    %c0_i32 = arith.constant 0 : i32
    %c0_i32_0 = arith.constant 0 : i32
    %c0_i32_1 = arith.constant 0 : i32
    return %arg0, %c0_i32, %c0_i32_0 : i32, i32, i32
  }
  func.func @transform_1(%arg0: i32, %arg1: i32) -> (i32, i32, i32) {
    %c0_i32 = arith.constant 0 : i32
    %c0_i32_0 = arith.constant 0 : i32
    %c0_i32_1 = arith.constant 0 : i32
    return %arg0, %c0_i32, %c0_i32_0 : i32, i32, i32
  }
  func.func @transform_2(%arg0: i32, %arg1: i32) -> (i32, i32, i32) {
    %c0_i32 = arith.constant 0 : i32
    %c0_i32_0 = arith.constant 0 : i32
    %c0_i32_1 = arith.constant 0 : i32
    %c0_i32_2 = arith.constant 0 : i32
    return %c0_i32, %c0_i32_0, %c0_i32_1 : i32, i32, i32
  }
  func.func @transform_3(%arg0: i32, %arg1: i32) -> (i32, i32, i32) {
    %c0_i32 = arith.constant 0 : i32
    %c0_i32_0 = arith.constant 0 : i32
    %c0_i32_1 = arith.constant 0 : i32
    %c0_i32_2 = arith.constant 0 : i32
    return %c0_i32, %c0_i32_0, %c0_i32_1 : i32, i32, i32
  }
  func.func @transform_4(%arg0: i32, %arg1: i32) -> (i32, i32, i32) {
    %c0_i32 = arith.constant 0 : i32
    %c0_i32_0 = arith.constant 0 : i32
    %c0_i32_1 = arith.constant 0 : i32
    %c0_i32_2 = arith.constant 0 : i32
    return %c0_i32, %c0_i32_0, %c0_i32_1 : i32, i32, i32
  }
  func.func @transform_5(%arg0: i32, %arg1: i32) -> (i32, i32) {
    %c0_i32 = arith.constant 0 : i32
    %c0_i32_0 = arith.constant 0 : i32
    %c0_i32_1 = arith.constant 0 : i32
    return %c0_i32, %c0_i32_0 : i32, i32
  }
  func.func @transform_6(%arg0: i32, %arg1: i32) -> (i32, i32) {
    %c0_i32 = arith.constant 0 : i32
    %c0_i32_0 = arith.constant 0 : i32
    %c0_i32_1 = arith.constant 0 : i32
    return %c0_i32, %c0_i32_0 : i32, i32
  }
  func.func @transform_7(%arg0: i32, %arg1: i32) -> (i32, i32) {
    %c0_i32 = arith.constant 0 : i32
    %c0_i32_0 = arith.constant 0 : i32
    %c0_i32_1 = arith.constant 0 : i32
    return %c0_i32, %c0_i32_0 : i32, i32
  }
  func.func @transform_8(%arg0: i32, %arg1: i32) -> (i32, i32, i32) {
    %c0_i32 = arith.constant 0 : i32
    %c0_i32_0 = arith.constant 0 : i32
    %c0_i32_1 = arith.constant 0 : i32
    return %arg0, %c0_i32, %c0_i32_0 : i32, i32, i32
  }
  func.func @transform_9(%arg0: i32, %arg1: i32) -> (i32, i32, i32, i32) {
    %c0_i32 = arith.constant 0 : i32
    %c0_i32_0 = arith.constant 0 : i32
    %c0_i32_1 = arith.constant 0 : i32
    return %arg1, %arg0, %c0_i32, %c0_i32_0 : i32, i32, i32, i32
  }
}

</mosaic_0001>

<llo_original>
// kernel: tpu_custom_call.1
$region0: #{tpu_custom_call.1}
  #allocation0 [shape = 'u32[]', space=smem, size = 0x4, offset = 0x4, fixed_abs, tag = 'smem constant byte address 0x4 - core index']
  #allocation1 [shape = 'u32[144,128]{1,0:T(1,128)}', space=vmem, size = 0x12000, scoped, tag = 'internal scratch']
  #allocation2 [shape = 'f32[8,32]{1,0:T(8,128)}', space=vmem, size = 0x1000, scoped, tag = 'scratch operand']
  %s0 = inlined_call_operand.vmem [shape: f32[2,8,32], index: 0, kind: input, shape index: {}]
  %s1 = inlined_call_operand.vmem [shape: s8[2,8,8], index: 1, kind: input, shape index: {}]
  %s2 = inlined_call_operand.vmem [shape: bf16[4,32,24], index: 2, kind: input, shape index: {}]
  %s3 = inlined_call_operand.vmem [shape: f32[4,1,24], index: 3, kind: input, shape index: {}]
  %s4 = inlined_call_operand.vmem [shape: bf16[4,8,32], index: 4, kind: input, shape index: {}]
  %s5 = inlined_call_operand.vmem [shape: f32[1,32], index: 5, kind: input, shape index: {}]
  %s6 = inlined_call_operand.vmem [shape: f32[1,32], index: 6, kind: input, shape index: {}]
  %s7 = inlined_call_operand.vmem [shape: f32[1,32], index: 7, kind: input, shape index: {}]
  %s8 = inlined_call_operand.hbm [shape: f32[2,8,32], index: 8, kind: output, shape index: {0}]
  %s9 = inlined_call_operand.hbm [shape: f32[4,2,8,8], index: 9, kind: output, shape index: {1}]
  %10 = xla_tuple %s8, %s9
  %s11 = sld [smem:[#allocation0]]
  $region81: #{tpu_custom_call.1} parent=0
    _
  %s13 = ssub.s32 1, %s11
  %s14 = scalar_select 0, %s13, %s11
  $region1: #{tpu_custom_call.1} parent=0
    #allocation3 [shape = 'u8[8192]{0}', space=vmem, size = 0x2000, scoped, tag = 'output window, operand 0']
    #allocation4 [shape = 's32[2]{0}', space=sflag, size = 0x8, scoped, tag = 'scoped memory for tpu_custom_call.1']
    #allocation5 [shape = 'u8[8192]{0}', space=vmem, size = 0x2000, scoped, tag = 'output window, operand 1']
    #allocation6 [shape = 's32[2]{0}', space=sflag, size = 0x8, scoped, tag = 'scoped memory for tpu_custom_call.1']
    %15 = vsyncpa [#allocation4], 0
    %s16 = scalar_lea.sflag [#allocation4], 1
    %17 = vsyncpa %s16, 0
    %18 = vsyncpa [#allocation6], 0
    %s19 = scalar_lea.sflag [#allocation6], 1
    %20 = vsyncpa %s19, 0
    loop: start=0, step=1, limit=10
    $region2: #{tpu_custom_call.1} parent=1 // loop_pre_header
      _
    $region3: #{tpu_custom_call.1} parent=1 // loop_header
      %s22 = sphi 0, %s26
      %p23 = scmp.ge.s32.totalorder %s22, 10
      %s29 = sphi 0, %s41
      %s30 = sphi 0, %s37
      %s31 = sphi 0, %s29
      %s32 = sphi 0, %s30
      %s33 = sphi 0, %s31
      %s34 = sphi 0, %s32
      %s44 = sphi 0, %s46
      %s47 = sphi 0, %s44
      %s48 = sphi 0, %s47
      %s64 = sphi 0, %s48
      %s70 = sphi 0, %s72
      %s73 = sphi 0, %s70
      %s74 = sphi 0, %s73
      %s90 = sphi 0, %s74
      %s94 = sphi 0, %s94
      %s96 = sphi 0, %s94
      %s97 = sphi 0, %s96
      %s111 = sphi 0, %s97
      %s115 = sphi 0, %s115
      %s117 = sphi 0, %s115
      %s118 = sphi 0, %s117
      %s132 = sphi 0, %s118
      %s136 = sphi 0, %s136
      %s138 = sphi 0, %s136
      %s139 = sphi 0, %s138
      %s153 = sphi 0, %s139
      %s157 = sphi 0, %s157
      %s159 = sphi 0, %s157
      %s160 = sphi 0, %s159
      %s174 = sphi 0, %s160
      %s178 = sphi 0, %s178
      %s180 = sphi 0, %s178
      %s181 = sphi 0, %s180
      %s195 = sphi 0, %s181
      %s199 = sphi 0, %s199
      %s201 = sphi 0, %s199
      %s202 = sphi 0, %s201
      %s216 = sphi 0, %s202
      %s222 = sphi 0, %s224
      %s225 = sphi 0, %s222
      %s226 = sphi 0, %s225
      %s242 = sphi 0, %s226
      %s250 = sphi 0, %s252
      %s253 = sphi 0, %s250
      %s254 = sphi 0, %s253
      %s270 = sphi 0, %s254
    $region4: #{tpu_custom_call.1} parent=1 // loop_header_branch
      %25 = sbr.rel (%p23) target = $region8
    $region5: #{tpu_custom_call.1} parent=1 // loop_body
      %s27 = ssub.s32 %s22, 1
      %s28 = ssub.s32 %s22, 2
      %s35 = sadd.s32 1, %s30
      %p36 = scmp.ge.s32.totalorder %s35, 4
      %s37 = scalar_select %p36, 0, %s35
      %s38 = sadd.s32 1, %s29
      %s39 = scalar_select %p36, %s38, %s29
      %p40 = scmp.ge.s32.totalorder %s39, 2
      %s41 = scalar_select %p40, 0, %s39
      %s42 = ssub.s32 %s29, %s41
      %p43 = scmp.eq.s32.totalorder %s42, 0
      %s45 = sadd.s32 %s44, 1
      %s46 = scalar_select %p43, %s44, %s45
      %p49 = pneg %p43
      %p50 = scmp.eq.s32.totalorder %s22, 7
      %p51 = por %p49, %p50
      %p52 = scmp.ne.s32.totalorder %s44, %s47
      %p53 = scmp.eq.s32.totalorder %s22, 0
      %p54 = por %p52, %p53
      %p55 = scmp.ne.s32.totalorder %s44, %s47
      %p56 = scmp.eq.s32.totalorder %s27, 7
      %p57 = por %p55, %p56
      %p58 = scmp.ne.s32.totalorder %s47, %s48
      %p59 = scmp.eq.s32.totalorder %s27, 0
      %p60 = por %p58, %p59
      %p61 = scmp.ne.s32.totalorder %s47, %s48
      %p62 = scmp.eq.s32.totalorder %s28, 7
      %p63 = por %p61, %p62
      %p65 = scmp.ne.s32.totalorder %s48, %s64
      %p66 = scmp.eq.s32.totalorder %s28, 0
      %p67 = por %p65, %p66
      %s68 = ssub.s32 %s29, %s41
      %p69 = scmp.eq.s32.totalorder %s68, 0
      %s71 = sadd.s32 %s70, 1
      %s72 = scalar_select %p69, %s70, %s71
      %p75 = pneg %p69
      %p76 = scmp.eq.s32.totalorder %s22, 7
      %p77 = por %p75, %p76
      %p78 = scmp.ne.s32.totalorder %s70, %s73
      %p79 = scmp.eq.s32.totalorder %s22, 0
      %p80 = por %p78, %p79
      %p81 = scmp.ne.s32.totalorder %s70, %s73
      %p82 = scmp.eq.s32.totalorder %s27, 7
      %p83 = por %p81, %p82
      %p84 = scmp.ne.s32.totalorder %s73, %s74
      %p85 = scmp.eq.s32.totalorder %s27, 0
      %p86 = por %p84, %p85
      %p87 = scmp.ne.s32.totalorder %s73, %s74
      %p88 = scmp.eq.s32.totalorder %s28, 7
      %p89 = por %p87, %p88
      %p91 = scmp.ne.s32.totalorder %s74, %s90
      %p92 = scmp.eq.s32.totalorder %s28, 0
      %p93 = por %p91, %p92
      %s95 = sadd.s32 %s94, 1
      %p98 = scmp.eq.s32.totalorder %s22, 7
      %p99 = scmp.ne.s32.totalorder %s94, %s96
      %p100 = scmp.eq.s32.totalorder %s22, 0
      %p101 = por %p99, %p100
      %p102 = scmp.ne.s32.totalorder %s94, %s96
      %p103 = scmp.eq.s32.totalorder %s27, 7
      %p104 = por %p102, %p103
      %p105 = scmp.ne.s32.totalorder %s96, %s97
      %p106 = scmp.eq.s32.totalorder %s27, 0
      %p107 = por %p105, %p106
      %p108 = scmp.ne.s32.totalorder %s96, %s97
      %p109 = scmp.eq.s32.totalorder %s28, 7
      %p110 = por %p108, %p109
      %p112 = scmp.ne.s32.totalorder %s97, %s111
      %p113 = scmp.eq.s32.totalorder %s28, 0
      %p114 = por %p112, %p113
      %s116 = sadd.s32 %s115, 1
      %p119 = scmp.eq.s32.totalorder %s22, 7
      %p120 = scmp.ne.s32.totalorder %s115, %s117
      %p121 = scmp.eq.s32.totalorder %s22, 0
      %p122 = por %p120, %p121
      %p123 = scmp.ne.s32.totalorder %s115, %s117
      %p124 = scmp.eq.s32.totalorder %s27, 7
      %p125 = por %p123, %p124
      %p126 = scmp.ne.s32.totalorder %s117, %s118
      %p127 = scmp.eq.s32.totalorder %s27, 0
      %p128 = por %p126, %p127
      %p129 = scmp.ne.s32.totalorder %s117, %s118
      %p130 = scmp.eq.s32.totalorder %s28, 7
      %p131 = por %p129, %p130
      %p133 = scmp.ne.s32.totalorder %s118, %s132
      %p134 = scmp.eq.s32.totalorder %s28, 0
      %p135 = por %p133, %p134
      %s137 = sadd.s32 %s136, 1
      %p140 = scmp.eq.s32.totalorder %s22, 7
      %p141 = scmp.ne.s32.totalorder %s136, %s138
      %p142 = scmp.eq.s32.totalorder %s22, 0
      %p143 = por %p141, %p142
      %p144 = scmp.ne.s32.totalorder %s136, %s138
      %p145 = scmp.eq.s32.totalorder %s27, 7
      %p146 = por %p144, %p145
      %p147 = scmp.ne.s32.totalorder %s138, %s139
      %p148 = scmp.eq.s32.totalorder %s27, 0
      %p149 = por %p147, %p148
      %p150 = scmp.ne.s32.totalorder %s138, %s139
      %p151 = scmp.eq.s32.totalorder %s28, 7
      %p152 = por %p150, %p151
      %p154 = scmp.ne.s32.totalorder %s139, %s153
      %p155 = scmp.eq.s32.totalorder %s28, 0
      %p156 = por %p154, %p155
      %s158 = sadd.s32 %s157, 1
      %p161 = scmp.eq.s32.totalorder %s22, 7
      %p162 = scmp.ne.s32.totalorder %s157, %s159
      %p163 = scmp.eq.s32.totalorder %s22, 0
      %p164 = por %p162, %p163
      %p165 = scmp.ne.s32.totalorder %s157, %s159
      %p166 = scmp.eq.s32.totalorder %s27, 7
      %p167 = por %p165, %p166
      %p168 = scmp.ne.s32.totalorder %s159, %s160
      %p169 = scmp.eq.s32.totalorder %s27, 0
      %p170 = por %p168, %p169
      %p171 = scmp.ne.s32.totalorder %s159, %s160
      %p172 = scmp.eq.s32.totalorder %s28, 7
      %p173 = por %p171, %p172
      %p175 = scmp.ne.s32.totalorder %s160, %s174
      %p176 = scmp.eq.s32.totalorder %s28, 0
      %p177 = por %p175, %p176
      %s179 = sadd.s32 %s178, 1
      %p182 = scmp.eq.s32.totalorder %s22, 7
      %p183 = scmp.ne.s32.totalorder %s178, %s180
      %p184 = scmp.eq.s32.totalorder %s22, 0
      %p185 = por %p183, %p184
      %p186 = scmp.ne.s32.totalorder %s178, %s180
      %p187 = scmp.eq.s32.totalorder %s27, 7
      %p188 = por %p186, %p187
      %p189 = scmp.ne.s32.totalorder %s180, %s181
      %p190 = scmp.eq.s32.totalorder %s27, 0
      %p191 = por %p189, %p190
      %p192 = scmp.ne.s32.totalorder %s180, %s181
      %p193 = scmp.eq.s32.totalorder %s28, 7
      %p194 = por %p192, %p193
      %p196 = scmp.ne.s32.totalorder %s181, %s195
      %p197 = scmp.eq.s32.totalorder %s28, 0
      %p198 = por %p196, %p197
      %s200 = sadd.s32 %s199, 1
      %p203 = scmp.eq.s32.totalorder %s22, 7
      %p204 = scmp.ne.s32.totalorder %s199, %s201
      %p205 = scmp.eq.s32.totalorder %s22, 0
      %p206 = por %p204, %p205
      %p207 = scmp.ne.s32.totalorder %s199, %s201
      %p208 = scmp.eq.s32.totalorder %s27, 7
      %p209 = por %p207, %p208
      %p210 = scmp.ne.s32.totalorder %s201, %s202
      %p211 = scmp.eq.s32.totalorder %s27, 0
      %p212 = por %p210, %p211
      %p213 = scmp.ne.s32.totalorder %s201, %s202
      %p214 = scmp.eq.s32.totalorder %s28, 7
      %p215 = por %p213, %p214
      %p217 = scmp.ne.s32.totalorder %s202, %s216
      %p218 = scmp.eq.s32.totalorder %s28, 0
      %p219 = por %p217, %p218
      %s220 = ssub.s32 %s29, %s41
      %p221 = scmp.eq.s32.totalorder %s220, 0
      %s223 = sadd.s32 %s222, 1
      %s224 = scalar_select %p221, %s222, %s223
      %p227 = pneg %p221
      %p228 = scmp.eq.s32.totalorder %s22, 7
      %p229 = por %p227, %p228
      %p230 = scmp.ne.s32.totalorder %s222, %s225
      %p231 = scmp.eq.s32.totalorder %s22, 0
      %p232 = por %p230, %p231
      %p233 = scmp.ne.s32.totalorder %s222, %s225
      %p234 = scmp.eq.s32.totalorder %s27, 7
      %p235 = por %p233, %p234
      %p236 = scmp.ne.s32.totalorder %s225, %s226
      %p237 = scmp.eq.s32.totalorder %s27, 0
      %p238 = por %p236, %p237
      %p239 = scmp.ne.s32.totalorder %s225, %s226
      %p240 = scmp.eq.s32.totalorder %s28, 7
      %p241 = por %p239, %p240
      %p243 = scmp.ne.s32.totalorder %s226, %s242
      %p244 = scmp.eq.s32.totalorder %s28, 0
      %p245 = por %p243, %p244
      %s246 = ssub.s32 %s30, %s37
      %s247 = ssub.s32 %s29, %s41
      %s248 = sor.u32 %s246, %s247
      %p249 = scmp.eq.s32.totalorder %s248, 0
      %s251 = sadd.s32 %s250, 1
      %s252 = scalar_select %p249, %s250, %s251
      %p255 = pneg %p249
      %p256 = scmp.eq.s32.totalorder %s22, 7
      %p257 = por %p255, %p256
      %p258 = scmp.ne.s32.totalorder %s250, %s253
      %p259 = scmp.eq.s32.totalorder %s22, 0
      %p260 = por %p258, %p259
      %p261 = scmp.ne.s32.totalorder %s250, %s253
      %p262 = scmp.eq.s32.totalorder %s27, 7
      %p263 = por %p261, %p262
      %p264 = scmp.ne.s32.totalorder %s253, %s254
      %p265 = scmp.eq.s32.totalorder %s27, 0
      %p266 = por %p264, %p265
      %p267 = scmp.ne.s32.totalorder %s253, %s254
      %p268 = scmp.eq.s32.totalorder %s28, 7
      %p269 = por %p267, %p268
      %p271 = scmp.ne.s32.totalorder %s254, %s270
      %p272 = scmp.eq.s32.totalorder %s28, 0
      %p273 = por %p271, %p272
      %p274 = scmp.le.s32.totalorder 1, %s22
      %p275 = scmp.lt.s32.totalorder %s22, 9
      %p276 = pnand %p274, %p275
      %p277 = pneg %p276
      // Predicated region
      $region9: #{tpu_custom_call.1} parent=5 // pred_check
        _
      $region10: #{tpu_custom_call.1} parent=5 // pred_check_branch
        %279 = sbr.rel (%p276) target = $region12
      $region11: #{tpu_custom_call.1} parent=5 // pred_region
        %s280 = ssub.s32 %s22, 1
        // Predicated region
        $region13: #{tpu_custom_call.1} parent=11 // pred_check
          %p281 = pneg %p107
        $region14: #{tpu_custom_call.1} parent=11 // pred_check_branch
          %283 = sbr.rel (%p281) target = $region16
        $region15: #{tpu_custom_call.1} parent=11 // pred_region
          _
        $region16: #{tpu_custom_call.1} parent=11 // pred_fallthru
          _
        // Predicated region
        $region17: #{tpu_custom_call.1} parent=11 // pred_check
          %p284 = pneg %p128
        $region18: #{tpu_custom_call.1} parent=11 // pred_check_branch
          %286 = sbr.rel (%p284) target = $region20
        $region19: #{tpu_custom_call.1} parent=11 // pred_region
          _
        $region20: #{tpu_custom_call.1} parent=11 // pred_fallthru
          _
        // Predicated region
        $region21: #{tpu_custom_call.1} parent=11 // pred_check
          %p287 = pneg %p149
        $region22: #{tpu_custom_call.1} parent=11 // pred_check_branch
          %289 = sbr.rel (%p287) target = $region24
        $region23: #{tpu_custom_call.1} parent=11 // pred_region
          _
        $region24: #{tpu_custom_call.1} parent=11 // pred_fallthru
          _
        // Predicated region
        $region25: #{tpu_custom_call.1} parent=11 // pred_check
          %p290 = pneg %p170
        $region26: #{tpu_custom_call.1} parent=11 // pred_check_branch
          %292 = sbr.rel (%p290) target = $region28
        $region27: #{tpu_custom_call.1} parent=11 // pred_region
          _
        $region28: #{tpu_custom_call.1} parent=11 // pred_fallthru
          _
        // Predicated region
        $region29: #{tpu_custom_call.1} parent=11 // pred_check
          %p293 = pneg %p191
        $region30: #{tpu_custom_call.1} parent=11 // pred_check_branch
          %295 = sbr.rel (%p293) target = $region32
        $region31: #{tpu_custom_call.1} parent=11 // pred_region
          _
        $region32: #{tpu_custom_call.1} parent=11 // pred_fallthru
          _
        // Predicated region
        $region33: #{tpu_custom_call.1} parent=11 // pred_check
          %p296 = pneg %p212
        $region34: #{tpu_custom_call.1} parent=11 // pred_check_branch
          %298 = sbr.rel (%p296) target = $region36
        $region35: #{tpu_custom_call.1} parent=11 // pred_region
          _
        $region36: #{tpu_custom_call.1} parent=11 // pred_fallthru
          _
      $region12: #{tpu_custom_call.1} parent=5 // pred_fallthru
        _
      %p299 = scmp.lt.s32.totalorder %s22, 8
      // Predicated region
      $region37: #{tpu_custom_call.1} parent=5 // pred_check
        %p300 = pneg %p299
      $region38: #{tpu_custom_call.1} parent=5 // pred_check_branch
        %302 = sbr.rel (%p300) target = $region40
      $region39: #{tpu_custom_call.1} parent=5 // pred_region
        // Predicated region
        $region41: #{tpu_custom_call.1} parent=39 // pred_check
          %p303 = pneg %p54
        $region42: #{tpu_custom_call.1} parent=39 // pred_check_branch
          %305 = sbr.rel (%p303) target = $region44
        $region43: #{tpu_custom_call.1} parent=39 // pred_region
          %p306 = scmp.lt.s32.totalorder %s29, 1
          %s307 = scalar_select %p306, %s29, 1
          %s308 = smul.addr %s307, 8
          %s309 = scalar_lea.vmem %s0, %s308
        $region44: #{tpu_custom_call.1} parent=39 // pred_fallthru
          _
        // Predicated region
        $region45: #{tpu_custom_call.1} parent=39 // pred_check
          %p310 = pneg %p80
        $region46: #{tpu_custom_call.1} parent=39 // pred_check_branch
          %312 = sbr.rel (%p310) target = $region48
        $region47: #{tpu_custom_call.1} parent=39 // pred_region
          %p313 = scmp.lt.s32.totalorder %s29, 1
          %s314 = scalar_select %p313, %s29, 1
          %s315 = smul.addr %s314, 2
          %s316 = scalar_lea.vmem %s1, %s315
        $region48: #{tpu_custom_call.1} parent=39 // pred_fallthru
          _
      $region40: #{tpu_custom_call.1} parent=5 // pred_fallthru
        _
      %p317 = scmp.le.s32.totalorder 1, %s22
      %p318 = scmp.lt.s32.totalorder %s22, 9
      %p319 = pnand %p317, %p318
      %p320 = pneg %p319
      // Predicated region
      $region49: #{tpu_custom_call.1} parent=5 // pred_check
        _
      $region50: #{tpu_custom_call.1} parent=5 // pred_check_branch
        %322 = sbr.rel (%p319) target = $region52
      $region51: #{tpu_custom_call.1} parent=5 // pred_region
        %s323 = ssub.s32 %s22, 1
        %p324 = scmp.lt.s32.totalorder %s31, 1
        %s325 = scalar_select %p324, %s31, 1
        %s326 = smul.addr %s325, 8
        %s327 = scalar_lea.vmem %s0, %s326
        %p328 = pneg %p60
        %p329 = pneg %p57
        %p330 = scmp.lt.s32.totalorder %s31, 1
        %s331 = scalar_select %p330, %s31, 1
        %s332 = smul.addr %s331, 2
        %s333 = scalar_lea.vmem %s1, %s332
        %p334 = pneg %p86
        %p335 = pneg %p83
        %p336 = pneg %p107
        %p337 = pneg %p104
        %p338 = pneg %p128
        %p339 = pneg %p125
        %p340 = pneg %p149
        %p341 = pneg %p146
        %p342 = pneg %p170
        %p343 = pneg %p167
        %p344 = pneg %p191
        %p345 = pneg %p188
        %p346 = pneg %p212
        %p347 = pneg %p209
        %p348 = pneg %p238
        %p349 = pneg %p235
        %s350 = sand.u32 %s225, 1
        %s351 = scalar_lea.sflag [#allocation4], %s350
        %s352 = sand.u32 %s225, 1
        %s353 = smul.addr %s352, 8
        %s354 = scalar_lea.vmem [#allocation3], %s353
        %p355 = pneg %p266
        %p356 = pneg %p263
        %s357 = sand.u32 %s253, 1
        %s358 = scalar_lea.sflag [#allocation6], %s357
        %s359 = sand.u32 %s253, 1
        %s360 = smul.addr %s359, 8
        %s361 = scalar_lea.vmem [#allocation5], %s360
        %p362 = scmp.lt.s32.totalorder %s31, 1
        %s363 = scalar_select %p362, %s31, 1
        %s364 = smul.addr %s363, 8
        %s365 = scalar_lea.vmem %s0, %s364
        %p366 = scmp.lt.s32.totalorder %s31, 1
        %s367 = scalar_select %p366, %s31, 1
        %s368 = smul.addr %s367, 2
        %s369 = scalar_lea.vmem %s1, %s368
        %v371 = vld [vmem:[%s365] sm:$0xff]
        %v372 = vpack.c.bf16 %v371, %v371
        %s373 = smul.u32 %s32, 4
        %s374 = smul.addr %s373, 4
        %s375 = scalar_lea.vmem %s2, %s374
        %v376 = vld [vmem:[%s375] sm:$0xf]
        %v377 = vld [vmem:[%s375 + $0x4] sm:$0xf]
        %v378 = vld [vmem:[%s375 + $0x8] sm:$0xf]
        %v379 = vld [vmem:[%s375 + $0xc] sm:$0xf]
        %s380 = scalar_lea.vmem %s3, %s32
        %v381 = vld [vmem:[%s380] sm:$0x1]
        %v383 = vlaneseq
        %v384 = vshrl.u32 %v383, 7
        %v385 = vsub.s32 0, %v384
        %v386 = vrot.slane %v381, %v385
        %v392 = vunpack.c.l.b16 %v376
        %v393 = vunpack.c.l.b16 %v377
        %v394 = vunpack.c.l.b16 %v378
        %v395 = vunpack.c.l.b16 %v379
        %v396 = vpack.c.b16 %v393, %v392
        %v397 = vpack.c.b16 %v395, %v394
        %vm400 = vcmask 261120
        %v402 = vsel %vm400, %v372, 0
        %404 = vmatprep.subr.bf16.mxu0 0
        %405 = vmatpush1.bf16.msra.mxu0 %v396
        %406 = vmatprep.subr.bf16.mxu0 0
        %407 = vmatpush1.bf16.msra.mxu0 %v397
        %408 = vmatprep.subr.bf16.mxu0 0
        %409 = vmatpush1.bf16.msra.mxu0 0
        %410 = vmatprep.subr.bf16.mxu0 0
        %411 = vmatpush1.bf16.msra.mxu0 0
        %412 = vmatprep.subr.bf16.mxu0 0
        %413 = vmatpush1.bf16.msra.mxu0 0
        %414 = vmatprep.subr.bf16.mxu0 0
        %415 = vmatpush1.bf16.msra.mxu0 0
        %416 = vmatprep.subr.bf16.mxu0 0
        %417 = vmatpush1.bf16.msra.mxu0 0
        %418 = vmatprep.subr.bf16.mxu0 0
        %419 = vmatpush1.bf16.msra.mxu0 0
        %420 = vmatprep.subr.bf16.mxu0 0
        %421 = vmatpush1.bf16.msra.mxu0 0
        %422 = vmatprep.subr.bf16.mxu0 0
        %423 = vmatpush1.bf16.msra.mxu0 0
        %424 = vmatprep.subr.bf16.mxu0 0
        %425 = vmatpush1.bf16.msra.mxu0 0
        %426 = vmatprep.subr.bf16.mxu0 0
        %427 = vmatpush1.bf16.msra.mxu0 0
        %428 = vmatprep.subr.bf16.mxu0 0
        %429 = vmatpush1.bf16.msra.mxu0 0
        %430 = vmatprep.subr.bf16.mxu0 0
        %431 = vmatpush1.bf16.msra.mxu0 0
        %432 = vmatprep.subr.bf16.mxu0 0
        %433 = vmatpush1.bf16.msra.mxu0 0
        %434 = vmatprep.subr.bf16.mxu0 0
        %435 = vmatpush1.bf16.msra.mxu0 0
        %436 = vmatprep.mubr.bf16.mxu0 0
        %437 = vmatmul.mubr.bf16.gmra.mrb[0].mxu0 %v402
        %v438 = vpop.f32.mrb[0].mxu0
        %v439 = vadd.f32 %v386, %v438
        %v440 = vpop.f32.mrb[0].mxu0
        %v441 = vpop.f32.mrb[0].mxu0
        %v442 = vpop.f32.mrb[0].mxu0
        %443 = vdwg.mxu0
        %v444 = vpack.c.bf16 %v439, %v439
        %v445 = vld [vmem:[%s369] sm:$0x3]
        %v446 = vunpack.c.0.s8 %v445
        %v447 = vcvt.s32.f32 %v446
        %v448 = vmul.f32 %v447, -1e+30
        %450 = vrot.lane.b32.xlu0 %v444, 120
        %v451 = vpop.permute.xlu0 %450
        %vm452 = vcmask 64512
        %v454 = vsel %vm452, %v444, 0
        %v457 = vsel %vm452, %v451, 0
        %459 = vmatprep.subr.bf16.mxu0 0
        %460 = vmatpush1.bf16.xpose.msra.mxu0 %v457
        %461 = vmatprep.subr.bf16.mxu0 0
        %462 = vmatpush1.bf16.xpose.msra.mxu0 0
        %463 = vmatprep.subr.bf16.mxu0 0
        %464 = vmatpush1.bf16.xpose.msra.mxu0 0
        %465 = vmatprep.subr.bf16.mxu0 0
        %466 = vmatpush1.bf16.xpose.msra.mxu0 0
        %467 = vmatprep.subr.bf16.mxu0 0
        %468 = vmatpush1.bf16.xpose.msra.mxu0 0
        %469 = vmatprep.subr.bf16.mxu0 0
        %470 = vmatpush1.bf16.xpose.msra.mxu0 0
        %471 = vmatprep.subr.bf16.mxu0 0
        %472 = vmatpush1.bf16.xpose.msra.mxu0 0
        %473 = vmatprep.subr.bf16.mxu0 0
        %474 = vmatpush1.bf16.xpose.msra.mxu0 0
        %475 = vmatprep.subr.bf16.mxu0 0
        %476 = vmatpush1.bf16.xpose.msra.mxu0 0
        %477 = vmatprep.subr.bf16.mxu0 0
        %478 = vmatpush1.bf16.xpose.msra.mxu0 0
        %479 = vmatprep.subr.bf16.mxu0 0
        %480 = vmatpush1.bf16.xpose.msra.mxu0 0
        %481 = vmatprep.subr.bf16.mxu0 0
        %482 = vmatpush1.bf16.xpose.msra.mxu0 0
        %483 = vmatprep.subr.bf16.mxu0 0
        %484 = vmatpush1.bf16.xpose.msra.mxu0 0
        %485 = vmatprep.subr.bf16.mxu0 0
        %486 = vmatpush1.bf16.xpose.msra.mxu0 0
        %487 = vmatprep.subr.bf16.mxu0 0
        %488 = vmatpush1.bf16.xpose.msra.mxu0 0
        %489 = vmatprep.subr.bf16.mxu0 0
        %490 = vmatpush1.bf16.xpose.msra.mxu0 0
        %491 = vmatprep.mubr.bf16.mxu0 0
        %492 = vmatmul.mubr.bf16.gmra.mrb[0].mxu0 %v454
        %v493 = vpop.f32.mrb[0].mxu0
        %v494 = vadd.f32 %v448, %v493
        %v495 = vpop.f32.mrb[0].mxu0
        %v496 = vpop.f32.mrb[0].mxu0
        %v497 = vpop.f32.mrb[0].mxu0
        %498 = vdwg.mxu0
        %v499 = vsel %vm452, %v494, -inf
        %500 = vmax.xlane.f32.xlu0 %v499
        %v501 = vpop.xlane.xlu0 %500
        %v502 = vsub.f32 %v494, %v501
        %v503 = vmul.f32 %v502, 1.442695
        %v504 = vpow.pop %v503
        %v505 = vsel %vm452, %v504, 0.0
        %506 = vadd.xlane.f32.xlu0 %v505
        %v507 = vpop.xlane.xlu0 %506
        %v508 = vrcp.pop %v507
        %v509 = vmul.f32 %v504, %v508
        %510 = vst.msk [vmem:[%s361] sm:$0xff] %vm452, %v509
        %v511 = vpack.c.bf16 %v509, %v509
        %512 = vrot.lane.b32.xlu0 %v444, 112
        %v513 = vpop.permute.xlu0 %512
        %v515 = vsel %vm452, %v511, 0
        %vm517 = vcmask 1043456
        %v519 = vsel %vm517, %v513, 0
        %521 = vmatprep.subr.bf16.mxu0 0
        %522 = vmatpush1.bf16.msra.mxu0 %v519
        %523 = vmatprep.subr.bf16.mxu0 0
        %524 = vmatpush1.bf16.msra.mxu0 0
        %525 = vmatprep.subr.bf16.mxu0 0
        %526 = vmatpush1.bf16.msra.mxu0 0
        %527 = vmatprep.subr.bf16.mxu0 0
        %528 = vmatpush1.bf16.msra.mxu0 0
        %529 = vmatprep.subr.bf16.mxu0 0
        %530 = vmatpush1.bf16.msra.mxu0 0
        %531 = vmatprep.subr.bf16.mxu0 0
        %532 = vmatpush1.bf16.msra.mxu0 0
        %533 = vmatprep.subr.bf16.mxu0 0
        %534 = vmatpush1.bf16.msra.mxu0 0
        %535 = vmatprep.subr.bf16.mxu0 0
        %536 = vmatpush1.bf16.msra.mxu0 0
        %537 = vmatprep.subr.bf16.mxu0 0
        %538 = vmatpush1.bf16.msra.mxu0 0
        %539 = vmatprep.subr.bf16.mxu0 0
        %540 = vmatpush1.bf16.msra.mxu0 0
        %541 = vmatprep.subr.bf16.mxu0 0
        %542 = vmatpush1.bf16.msra.mxu0 0
        %543 = vmatprep.subr.bf16.mxu0 0
        %544 = vmatpush1.bf16.msra.mxu0 0
        %545 = vmatprep.subr.bf16.mxu0 0
        %546 = vmatpush1.bf16.msra.mxu0 0
        %547 = vmatprep.subr.bf16.mxu0 0
        %548 = vmatpush1.bf16.msra.mxu0 0
        %549 = vmatprep.subr.bf16.mxu0 0
        %550 = vmatpush1.bf16.msra.mxu0 0
        %551 = vmatprep.subr.bf16.mxu0 0
        %552 = vmatpush1.bf16.msra.mxu0 0
        %553 = vmatprep.mubr.bf16.mxu0 0
        %554 = vmatmul.mubr.bf16.gmra.mrb[0].mxu0 %v515
        %v555 = vpop.f32.mrb[0].mxu0
        %v556 = vadd.f32 0.0, %v555
        %v557 = vpop.f32.mrb[0].mxu0
        %v558 = vpop.f32.mrb[0].mxu0
        %v559 = vpop.f32.mrb[0].mxu0
        %560 = vdwg.mxu0
        %v561 = vpack.c.bf16 %v556, %v556
        %s562 = smul.addr %s32, 4
        %s563 = scalar_lea.vmem %s4, %s562
        %v564 = vld [vmem:[%s563] sm:$0xf]
        %v566 = vsel %vm452, %v561, 0
        %v569 = vsel %vm517, %v564, 0
        %571 = vmatprep.subr.bf16.mxu0 0
        %572 = vmatpush1.bf16.msra.mxu0 %v569
        %573 = vmatprep.subr.bf16.mxu0 0
        %574 = vmatpush1.bf16.msra.mxu0 0
        %575 = vmatprep.subr.bf16.mxu0 0
        %576 = vmatpush1.bf16.msra.mxu0 0
        %577 = vmatprep.subr.bf16.mxu0 0
        %578 = vmatpush1.bf16.msra.mxu0 0
        %579 = vmatprep.subr.bf16.mxu0 0
        %580 = vmatpush1.bf16.msra.mxu0 0
        %581 = vmatprep.subr.bf16.mxu0 0
        %582 = vmatpush1.bf16.msra.mxu0 0
        %583 = vmatprep.subr.bf16.mxu0 0
        %584 = vmatpush1.bf16.msra.mxu0 0
        %585 = vmatprep.subr.bf16.mxu0 0
        %586 = vmatpush1.bf16.msra.mxu0 0
        %587 = vmatprep.subr.bf16.mxu0 0
        %588 = vmatpush1.bf16.msra.mxu0 0
        %589 = vmatprep.subr.bf16.mxu0 0
        %590 = vmatpush1.bf16.msra.mxu0 0
        %591 = vmatprep.subr.bf16.mxu0 0
        %592 = vmatpush1.bf16.msra.mxu0 0
        %593 = vmatprep.subr.bf16.mxu0 0
        %594 = vmatpush1.bf16.msra.mxu0 0
        %595 = vmatprep.subr.bf16.mxu0 0
        %596 = vmatpush1.bf16.msra.mxu0 0
        %597 = vmatprep.subr.bf16.mxu0 0
        %598 = vmatpush1.bf16.msra.mxu0 0
        %599 = vmatprep.subr.bf16.mxu0 0
        %600 = vmatpush1.bf16.msra.mxu0 0
        %601 = vmatprep.subr.bf16.mxu0 0
        %602 = vmatpush1.bf16.msra.mxu0 0
        %603 = vmatprep.mubr.bf16.mxu0 0
        %604 = vmatmul.mubr.bf16.gmra.mrb[0].mxu0 %v566
        %v605 = vpop.f32.mrb[0].mxu0
        %v606 = vadd.f32 0.0, %v605
        %v607 = vpop.f32.mrb[0].mxu0
        %v608 = vpop.f32.mrb[0].mxu0
        %v609 = vpop.f32.mrb[0].mxu0
        %610 = vdwg.mxu0
        %p611 = scmp.eq.s32.totalorder %s32, 0
        // Predicated region
        $region53: #{tpu_custom_call.1} parent=51 // pred_check
          %p612 = pneg %p611
        $region54: #{tpu_custom_call.1} parent=51 // pred_check_branch
          %614 = sbr.rel (%p612) target = $region56
        $region55: #{tpu_custom_call.1} parent=51 // pred_region
          %615 = vst.msk [vmem:[#allocation2] sm:$0xff] %vm400, 0.0
        $region56: #{tpu_custom_call.1} parent=51 // pred_fallthru
          _
        %v616 = vld [vmem:[#allocation2] sm:$0xff]
        %v617 = vadd.f32 %v616, %v606
        %618 = vst.msk [vmem:[#allocation2] sm:$0xff] %vm400, %v617
        %p619 = scmp.eq.s32.totalorder %s32, 3
        // Predicated region
        $region57: #{tpu_custom_call.1} parent=51 // pred_check
          %p620 = pneg %p619
        $region58: #{tpu_custom_call.1} parent=51 // pred_check_branch
          %622 = sbr.rel (%p620) target = $region60
        $region59: #{tpu_custom_call.1} parent=51 // pred_region
          %v623 = vld [vmem:[#allocation2] sm:$0xff]
          %v624 = vld [vmem:[%s5] sm:$0x1]
          %v626 = vlaneseq
          %v627 = vshrl.u32 %v626, 7
          %v628 = vsub.s32 0, %v627
          %v629 = vrot.slane %v624, %v628
          %v631 = vadd.f32 %v623, %v629
          %v632 = vadd.f32 %v631, %v371
          %v633 = vsel %vm400, %v632, 0.0
          %634 = vadd.xlane.f32.xlu0 %v633
          %v635 = vpop.xlane.xlu0 %634
          %v636 = vrcp.pop 32.0
          %v637 = vmul.f32 %v635, %v636
          %v638 = vsub.f32 %v632, %v637
          %v639 = vmul.f32 %v638, %v638
          %v640 = vsel %vm400, %v639, 0.0
          %641 = vadd.xlane.f32.xlu0 %v640
          %v642 = vpop.xlane.xlu0 %641
          %v643 = vmul.f32 %v642, %v636
          %v644 = vadd.f32 %v643, 1e-05
          %v645 = vrsqrt.pop %v644
          %v646 = vmul.f32 %v638, %v645
          %v647 = vld [vmem:[%s6] sm:$0x1]
          %v649 = vlaneseq
          %v650 = vshrl.u32 %v649, 7
          %v651 = vsub.s32 0, %v650
          %v652 = vrot.slane %v647, %v651
          %v654 = vmul.f32 %v646, %v652
          %v655 = vld [vmem:[%s7] sm:$0x1]
          %v657 = vlaneseq
          %v658 = vshrl.u32 %v657, 7
          %v659 = vsub.s32 0, %v658
          %v660 = vrot.slane %v655, %v659
          %v662 = vadd.f32 %v654, %v660
          %663 = vst.msk [vmem:[%s354] sm:$0xff] %vm400, %v662
        $region60: #{tpu_custom_call.1} parent=51 // pred_fallthru
          _
        %s664 = sand.u32 %s225, 1
        %s665 = scalar_lea.sflag [#allocation4], %s664
        %s666 = sand.u32 %s225, 1
        %s667 = smul.addr %s666, 8
        %s668 = scalar_lea.vmem [#allocation3], %s667
        %s669 = sand.u32 %s253, 1
        %s670 = scalar_lea.sflag [#allocation6], %s669
        %s671 = sand.u32 %s253, 1
        %s672 = smul.addr %s671, 8
        %s673 = scalar_lea.vmem [#allocation5], %s672
        // Predicated region
        $region61: #{tpu_custom_call.1} parent=51 // pred_check
          %p674 = pneg %p235
        $region62: #{tpu_custom_call.1} parent=51 // pred_check_branch
          %676 = sbr.rel (%p674) target = $region64
        $region63: #{tpu_custom_call.1} parent=51 // pred_region
          %s678 = ssub.s32 128, 128
          %679 = vsyncadd %s665, %s678
          %s680 = smul.addr %s31, 128
          %s681 = scalar_lea.hbm %s8, %s680
          %s683 = sshll.u32 %s668, 4
          %s684 = int_to_ptr.vmem [resolvable:$true] %s683
          %686 = dma.vmem_to_hbm [thread:$0]  %s684, 128, %s681, %s665
        $region64: #{tpu_custom_call.1} parent=51 // pred_fallthru
          _
        // Predicated region
        $region65: #{tpu_custom_call.1} parent=51 // pred_check
          %p687 = pneg %p263
        $region66: #{tpu_custom_call.1} parent=51 // pred_check_branch
          %689 = sbr.rel (%p687) target = $region68
        $region67: #{tpu_custom_call.1} parent=51 // pred_region
          %s691 = ssub.s32 128, 128
          %692 = vsyncadd %s670, %s691
          %s693 = smul.addr %s32, 2
          %s694 = sadd.s32 %s31, %s693
          %s695 = smul.addr %s694, 128
          %s696 = scalar_lea.hbm %s9, %s695
          %s698 = sshll.u32 %s673, 4
          %s699 = int_to_ptr.vmem [resolvable:$true] %s698
          %701 = dma.vmem_to_hbm [thread:$0]  %s699, 128, %s696, %s670
        $region68: #{tpu_custom_call.1} parent=51 // pred_fallthru
          _
      $region52: #{tpu_custom_call.1} parent=5 // pred_fallthru
        _
      %p702 = scmp.le.s32.totalorder 2, %s22
      // Predicated region
      $region69: #{tpu_custom_call.1} parent=5 // pred_check
        %p703 = pneg %p702
      $region70: #{tpu_custom_call.1} parent=5 // pred_check_branch
        %705 = sbr.rel (%p703) target = $region72
      $region71: #{tpu_custom_call.1} parent=5 // pred_region
        %s706 = ssub.s32 %s22, 2
        // Predicated region
        $region73: #{tpu_custom_call.1} parent=71 // pred_check
          %p707 = pneg %p241
        $region74: #{tpu_custom_call.1} parent=71 // pred_check_branch
          %709 = sbr.rel (%p707) target = $region76
        $region75: #{tpu_custom_call.1} parent=71 // pred_region
          %s710 = sand.u32 %s226, 1
          %s711 = scalar_lea.sflag [#allocation4], %s710
          %s712 = sand.u32 %s226, 1
          %s713 = smul.addr %s712, 8
          %s714 = scalar_lea.vmem [#allocation3], %s713
          %715 = dma.done %s711, 128
        $region76: #{tpu_custom_call.1} parent=71 // pred_fallthru
          _
        // Predicated region
        $region77: #{tpu_custom_call.1} parent=71 // pred_check
          %p716 = pneg %p269
        $region78: #{tpu_custom_call.1} parent=71 // pred_check_branch
          %718 = sbr.rel (%p716) target = $region80
        $region79: #{tpu_custom_call.1} parent=71 // pred_region
          %s719 = sand.u32 %s254, 1
          %s720 = scalar_lea.sflag [#allocation6], %s719
          %s721 = sand.u32 %s254, 1
          %s722 = smul.addr %s721, 8
          %s723 = scalar_lea.vmem [#allocation5], %s722
          %724 = dma.done %s720, 128
        $region80: #{tpu_custom_call.1} parent=71 // pred_fallthru
          _
      $region72: #{tpu_custom_call.1} parent=5 // pred_fallthru
        _
    $region6: #{tpu_custom_call.1} parent=1 // loop_footer
      %s26 = sadd.s32 1, %s22
    $region7: #{tpu_custom_call.1} parent=1 // loop_footer_branch
      %21 = sbr.rel target = $region3
    $region8: #{tpu_custom_call.1} parent=1 // loop_exit
      _
    %725 = vsyncpa [#allocation4], 1
    %s726 = scalar_lea.sflag [#allocation4], 1
    %727 = vsyncpa %s726, 1
    %728 = vsyncpa [#allocation6], 1
    %s729 = scalar_lea.sflag [#allocation6], 1
    %730 = vsyncpa %s729, 1

</llo_original>
